<compile_context>
chip_gen: v7x
topology: tpu7x:2x2x1
jax: 0.10.0
libtpu: 0.0.40
codegen_flags: <defaults>
</compile_context>

<pallas_src>
import functools

import jax
import jax.numpy as jnp
from jax.experimental import pallas as pl
from jax.experimental.pallas import tpu as pltpu


def _round_up(x, m):
    return ((x + m - 1) // m) * m


def _vmem_capacity_bytes():
    """Physical VMEM per TensorCore; conservative fallback = 64 MiB (v7x)."""
    try:
        info = pltpu.get_tpu_info()
        cap = getattr(info, "vmem_capacity_bytes", None)
        if cap:
            return int(cap)
    except Exception:
        pass
    return 64 * 1024 * 1024


def _select_tiles(np_, R, fout_p):
    """Pick (tn, tk, h_resident, vmem_limit_bytes) so buffers stay ~<= cap/2 on
    every generation (v5e/v6e: 128 MiB physical, v7x: 64 MiB physical)."""
    cap = _vmem_capacity_bytes()
    budget = cap // 2

    # Row tile: as large as possible while keeping >= 2 row tiles so the "parallel"
    # axis can feed megacore / both v7x TensorCores.  (np_ is a multiple of 128.)
    tn = 128
    for cand in (1024, 512, 256):
        if np_ % cand == 0 and np_ // cand >= 2:
            tn = cand
            break

    # Fixed per-step buffers: x0 + out (f32, double-buffered) + inv_deg
    # (a (tn, 1) f32 block still occupies a full 128-lane tile in VMEM).
    fixed = 2 * (2 * tn * fout_p * 4) + 2 * tn * 128 * 4

    # Keep H fully VMEM-resident when it fits (counted x2: default double-buffering
    # allocates a second, never-refilled buffer; we avoid relying on Buffered(1)).
    h_bytes = R * np_ * fout_p * 2
    h_resident = (2 * h_bytes + fixed + 2 * 128 * 128) <= budget

    # Contraction (source-node) tile: VMEM use O(tn*tk), independent of graph size.
    tk = 128
    for cand in (4096, 2048, 1024, 512, 256, 128):
        if np_ % cand != 0:
            continue
        adj_b = 2 * tn * cand  # int8 adjacency, double-buffered
        h_b = 2 * h_bytes if h_resident else 2 * cand * fout_p * 2
        if adj_b + h_b + fixed <= budget:
            tk = cand
            break

    need = 2 * tn * tk + (2 * h_bytes if h_resident else 2 * tk * fout_p * 2) + fixed
    vmem_limit = int(min(cap * 3 // 4, max(2 * need, 32 * 1024 * 1024)))
    return tn, tk, h_resident, vmem_limit


# --------------------------------------------------------------------------
# Pallas kernel: one RGCN layer (neighbor aggregation + accumulation + ReLU)
# --------------------------------------------------------------------------
def _rgcn_layer_kernel(x0_ref, adj_ref, inv_ref, h_ref, o_ref, *,
                       tk, fout_p, h_resident):
    """Grid = (row_tiles, R, k_tiles).  Axes 1 (relation) and 2 (source k-tile) are
    reduction axes; the output block index depends only on the row axis, so o_ref
    stays VMEM-resident across them and acts as the accumulator (no scratch)."""
    r = pl.program_id(1)
    k = pl.program_id(2)

    @pl.when((r == 0) & (k == 0))
    def _init():
        # root transform + bias (precomputed outside in f32)
        o_ref[...] = x0_ref[...]

    # Adjacency is streamed as int8 edge counts; widen to bf16 for the MXU.
    a = adj_ref[...].astype(jnp.bfloat16)

    if h_resident:
        # H is a single VMEM-resident [R, Np, fout_p] block; slice out (tk, fout_p).
        h_blk = h_ref[r, pl.ds(pl.multiple_of(k * tk, tk), tk), :]
    else:
        h_blk = h_ref[...]

    part = jnp.dot(a, h_blk, preferred_element_type=jnp.float32)
    # Fold mean-normalization (1/deg) in as an f32 per-(relation, row) scale;
    # the extra VPU multiply is free (kernel is HBM-bound).
    o_ref[...] += inv_ref[...] * part

    @pl.when((r == pl.num_programs(1) - 1) & (k == pl.num_programs(2) - 1))
    def _finalize():
        o_ref[...] = jnp.maximum(o_ref[...], 0.0)


def rgcn_layer(x_pad, adj_counts, inv_deg, w, root, bias):
    """One RGCN layer + ReLU.

    x_pad:      [Np, Fin]      f32   node rows zero-padded to Np (multiple of 128)
    adj_counts: [R, Np, Np]    int8  unnormalized edge counts adj[r, dst, src]
    inv_deg:    [R, Np, 1]     f32   1 / max(deg, 1) per (relation, dst)
    w:          [R, Fin, Fout] f32
    root:       [Fin, Fout]    f32
    bias:       [1, Fout]      f32
    returns     [Np, Fout]     f32
    """
    np_, fin = x_pad.shape
    R = adj_counts.shape[0]
    fout = w.shape[-1]
    fout_p = _round_up(fout, 128)  # lane-dense output (unmasked stores)

    # Pad the output-feature dim (zero columns -> zero outputs, sliced off below).
    w_p = jnp.pad(w, ((0, 0), (0, 0), (0, fout_p - fout)))
    root_p = jnp.pad(root, ((0, 0), (0, fout_p - fout)))
    bias_p = jnp.pad(bias, ((0, 0), (0, fout_p - fout)))

    # Precompute in XLA (small lane-dense matmuls, not worth a pallas_call):
    #   H[r] = x @ W_r       : [R, Np, fout_p]  bf16 (neighbor messages per relation)
    #   x0   = x @ root + b  : [Np, fout_p]     f32  (accumulator init)
    h = jnp.einsum("nf,rfo->rno", x_pad, w_p).astype(jnp.bfloat16)
    x0 = jnp.dot(x_pad, root_p, preferred_element_type=jnp.float32) + bias_p

    tn, tk, h_resident, vmem_limit = _select_tiles(np_, R, fout_p)
    grid = (np_ // tn, R, np_ // tk)

    if h_resident:
        # Constant block index -> DMA'd once, kept resident across the whole grid.
        h_spec = pl.BlockSpec((R, np_, fout_p), lambda i, r, k: (0, 0, 0))
    else:
        h_spec = pl.BlockSpec((pl.Squeezed(), tk, fout_p), lambda i, r, k: (r, k, 0))

    h_traffic = R * np_ * fout_p * 2 * (1 if h_resident else np_ // tn)
    cost = pl.CostEstimate(
        flops=2 * R * np_ * np_ * fout_p,
        transcendentals=0,
        bytes_accessed=(R * np_ * np_             # int8 adjacency (dominant stream)
                        + h_traffic               # H (bf16)
                        + R * np_ * 4             # inv_deg (f32)
                        + 2 * np_ * fout_p * 4),  # x0 + output (f32)
    )

    kernel = functools.partial(_rgcn_layer_kernel, tk=tk, fout_p=fout_p,
                               h_resident=h_resident)

    out = pl.pallas_call(
        kernel,
        out_shape=jax.ShapeDtypeStruct((np_, fout_p), jnp.float32),
        grid_spec=pltpu.PrefetchScalarGridSpec(
            num_scalar_prefetch=0,
            grid=grid,
            in_specs=[
                # x0 : [Np, fout_p] -> (tn, fout_p) row tile
                pl.BlockSpec((tn, fout_p), lambda i, r, k: (i, 0)),
                # adj : [R, Np, Np] -> (tn, tk) tile of relation r (leading dim squeezed)
                pl.BlockSpec((pl.Squeezed(), tn, tk), lambda i, r, k: (r, i, k)),
                # inv_deg : [R, Np, 1] -> (tn, 1) row tile of relation r
                pl.BlockSpec((pl.Squeezed(), tn, 1), lambda i, r, k: (r, i, 0)),
                # H : resident whole array or streamed (tk, fout_p) block
                h_spec,
            ],
            out_specs=pl.BlockSpec((tn, fout_p), lambda i, r, k: (i, 0)),
        ),
        compiler_params=pltpu.CompilerParams(
            dimension_semantics=("parallel", "arbitrary", "arbitrary"),
            vmem_limit_bytes=vmem_limit,
        ),
        cost_estimate=cost,
    )(x0, adj_counts, inv_deg, h)

    return out[:, :fout]


# --------------------------------------------------------------------------
# Glue: adjacency construction, parameter setup, full forward
# --------------------------------------------------------------------------
def build_adjacency(edge_index, edge_type, num_nodes_padded, num_relations):
    """int8 per-relation edge-count adjacency + f32 per-(relation, row) 1/deg.

    Keeping the mean-normalization as a separate f32 scale (applied in-kernel)
    halves the dominant HBM stream vs. a normalized bf16 adjacency and removes
    the bf16 rounding of 1/deg."""
    src = edge_index[0]
    dst = edge_index[1]
    counts = jnp.zeros((num_relations, num_nodes_padded, num_nodes_padded),
                       jnp.float32)
    counts = counts.at[edge_type, dst, src].add(1.0)
    deg = counts.sum(axis=-1, keepdims=True)
    inv_deg = 1.0 / jnp.maximum(deg, 1.0)
    # TODO(synk): int8 saturates at 127 parallel edges per (relation, dst, src) pair.
    counts_i8 = jnp.clip(counts, 0.0, 127.0).astype(jnp.int8)
    return counts_i8, inv_deg


def init_conv_params(key, fin, fout, num_relations, num_bases):
    k_basis, k_comp, k_root, k_bias = jax.random.split(key, 4)
    scale_b = (2.0 / (fin + fout)) ** 0.5
    basis = scale_b * jax.random.normal(k_basis, (num_bases, fin, fout), jnp.float32)
    comp = jax.random.normal(k_comp, (num_relations, num_bases), jnp.float32) / num_bases
    root = scale_b * jax.random.normal(k_root, (fin, fout), jnp.float32)
    bias = jnp.zeros((1, fout), jnp.float32)
    return dict(basis=basis, comp=comp, root=root, bias=bias)


@functools.partial(jax.jit, static_argnames=("num_nodes", "num_relations"))
def rgcn_forward(params, x, edge_index, edge_type, num_nodes, num_relations,
                 query=None):
    n_pad = _round_up(num_nodes, 128)
    adj_counts, inv_deg = build_adjacency(edge_index, edge_type, n_pad, num_relations)
    h = jnp.pad(x, ((0, n_pad - num_nodes), (0, 0)))
    for layer_params in params:
        # Basis combination: tiny [R,B]x[B,Fin*Fout] matmul -> plain XLA.
        w = jnp.einsum("rb,bio->rio", layer_params["comp"], layer_params["basis"])
        h = rgcn_layer(h, adj_counts, inv_deg, w, layer_params["root"],
                       layer_params["bias"])
        # ReLU is fused into the kernel; dropout is identity in eval mode.
    return h[:num_nodes]


def reference_forward(params, x, edge_index, edge_type, num_nodes, num_relations):
    """Pure-JAX f32 reference (same semantics) for a correctness sanity check."""
    src, dst = edge_index[0], edge_index[1]
    adj = jnp.zeros((num_relations, num_nodes, num_nodes), jnp.float32)
    adj = adj.at[edge_type, dst, src].add(1.0)
    adj = adj / jnp.maximum(adj.sum(-1, keepdims=True), 1.0)
    h = x
    for p in params:
        w = jnp.einsum("rb,bio->rio", p["comp"], p["basis"])
        msg = jnp.einsum("rds,sf,rfo->do", adj, h, w)
        h = jax.nn.relu(msg + h @ p["root"] + p["bias"])
    return h


# --------------------------------------------------------------------------
# Main
# --------------------------------------------------------------------------
if __name__ == "__main__":
    key = jax.random.PRNGKey(0)
    k_x, k_ei, k_et, k_p1, k_p2 = jax.random.split(key, 5)

    num_nodes = 16
    num_edges = 40
    in_channels = 8
    hidden_channels = 32
    out_channels = 16
    num_relations = 3
    num_bases = 10

    x = jax.random.normal(k_x, (num_nodes, in_channels), jnp.float32)
    edge_index = jax.random.randint(k_ei, (2, num_edges), 0, num_nodes, jnp.int32)
    edge_type = jax.random.randint(k_et, (num_edges,), 0, num_relations, jnp.int32)

    params = [
        init_conv_params(k_p1, in_channels, hidden_channels, num_relations, num_bases),
        init_conv_params(k_p2, hidden_channels, out_channels, num_relations, num_bases),
    ]

    out = rgcn_forward(params, x, edge_index, edge_type,
                       num_nodes=num_nodes, num_relations=num_relations)
    out = jax.block_until_ready(out)

    assert out.shape == (num_nodes, out_channels), out.shape
    assert bool(jnp.all(jnp.isfinite(out))), "non-finite output"

    ref = reference_forward(params, x, edge_index, edge_type,
                            num_nodes, num_relations)
    max_err = float(jnp.max(jnp.abs(out - ref)))
    assert max_err < 0.1, f"kernel/reference mismatch: max_err={max_err}"

    print("KERNEL_OK")
</pallas_src>

<mosaic_0001>
module attributes {stable_mosaic.version = 11 : i64} {
  func.func @_rgcn_layer_kernel(%arg0: i32, %arg1: i32, %arg2: i32, %arg3: memref<128x128xf32, #tpu.memory_space<vmem>>, %arg4: memref<1x128x128xi8, #tpu.memory_space<vmem>>, %arg5: memref<1x128x1xf32, #tpu.memory_space<vmem>>, %arg6: memref<3x128x128xbf16, #tpu.memory_space<vmem>>, %arg7: memref<128x128xf32, #tpu.memory_space<vmem>>) attributes {dimension_semantics = [#tpu.dimension_semantics<parallel>, #tpu.dimension_semantics<arbitrary>, #tpu.dimension_semantics<arbitrary>], iteration_bounds = array<i64: 1, 3, 1>, scalar_prefetch = 0 : i64, scratch_operands = 0 : i64, tpu.core_type = #tpu.core_type<tc>, window_params = [{transform_indices = @transform_0, window_bounds = array<i64: 128, 128>}, {transform_indices = @transform_1, window_bounds = array<i64: 1, 128, 128>}, {transform_indices = @transform_2, window_bounds = array<i64: 1, 128, 1>}, {pipeline_mode = #tpu.pipeline_mode<synchronous>, transform_indices = @transform_3, window_bounds = array<i64: 3, 128, 128>}, {transform_indices = @transform_4, window_bounds = array<i64: 128, 128>}]} {
    %c0_i32 = arith.constant 0 : i32
    %0 = arith.cmpi eq, %arg1, %c0_i32 : i32
    %c0_i32_0 = arith.constant 0 : i32
    %1 = arith.cmpi eq, %arg2, %c0_i32_0 : i32
    %2 = arith.andi %0, %1 : i1
    %3 = arith.extui %2 : i1 to i32
    %c0_i32_1 = arith.constant 0 : i32
    %4 = arith.cmpi ne, %3, %c0_i32_1 : i32
    scf.if %4 {
      %c0_14 = arith.constant 0 : index
      %c0_15 = arith.constant 0 : index
      %27 = vector.load %arg3[%c0_14, %c0_15] : memref<128x128xf32, #tpu.memory_space<vmem>>, vector<128x128xf32>
      %c0_16 = arith.constant 0 : index
      %c0_17 = arith.constant 0 : index
      %28 = vector.load %arg7[%c0_16, %c0_17] : memref<128x128xf32, #tpu.memory_space<vmem>>, vector<128x128xf32>
      tpu.vector_store %arg7[%c0_16, %c0_17], %27 {strides = array<i32>} : memref<128x128xf32, #tpu.memory_space<vmem>>, vector<128x128xf32>,
    } else {
    }
    %c0 = arith.constant 0 : index
    %c0_2 = arith.constant 0 : index
    %c0_3 = arith.constant 0 : index
    %5 = vector.load %arg4[%c0, %c0_2, %c0_3] : memref<1x128x128xi8, #tpu.memory_space<vmem>>, vector<1x128x128xi8>
    %6 = vector.shape_cast %5 : vector<1x128x128xi8> to vector<128x128xi8>
    %7 = arith.sitofp %6 : vector<128x128xi8> to vector<128x128xbf16>
    %c128_i32 = arith.constant 128 : i32
    %8 = arith.muli %arg2, %c128_i32 : i32
    %9 = tpu.assume_multiple %8, 128 : i32
    %10 = arith.index_cast %arg1 : i32 to index
    %11 = arith.index_cast %9 : i32 to index
    %c0_4 = arith.constant 0 : index
    %12 = vector.load %arg6[%10, %11, %c0_4] : memref<3x128x128xbf16, #tpu.memory_space<vmem>>, vector<1x128x128xbf16>
    %13 = vector.shape_cast %12 : vector<1x128x128xbf16> to vector<128x128xbf16>
    %cst = arith.constant dense<0.000000e+00> : vector<128x128xf32>
    %14 = tpu.matmul %7, %13, %cst {dimension_numbers = #tpu.dot_dimension_numbers<[1], [0], [0], [1], [0, 0, 1, 1], [], []>} : vector<128x128xbf16>, vector<128x128xbf16>, vector<128x128xf32> -> vector<128x128xf32>
    %c0_5 = arith.constant 0 : index
    %c0_6 = arith.constant 0 : index
    %15 = vector.load %arg7[%c0_5, %c0_6] : memref<128x128xf32, #tpu.memory_space<vmem>>, vector<128x128xf32>
    %c0_7 = arith.constant 0 : index
    %c0_8 = arith.constant 0 : index
    %c0_9 = arith.constant 0 : index
    %16 = vector.load %arg5[%c0_7, %c0_8, %c0_9] : memref<1x128x1xf32, #tpu.memory_space<vmem>>, vector<1x128x1xf32>
    %17 = vector.shape_cast %16 : vector<1x128x1xf32> to vector<128x1xf32>
    %18 = vector.broadcast %17 : vector<128x1xf32> to vector<128x128xf32>
    %19 = arith.mulf %18, %14 : vector<128x128xf32>
    %20 = arith.addf %15, %19 : vector<128x128xf32>
    %c0_10 = arith.constant 0 : index
    %c0_11 = arith.constant 0 : index
    %21 = vector.load %arg7[%c0_10, %c0_11] : memref<128x128xf32, #tpu.memory_space<vmem>>, vector<128x128xf32>
    tpu.vector_store %arg7[%c0_10, %c0_11], %20 {strides = array<i32>} : memref<128x128xf32, #tpu.memory_space<vmem>>, vector<128x128xf32>,
    %c2_i32 = arith.constant 2 : i32
    %22 = arith.cmpi eq, %arg1, %c2_i32 : i32
    %c0_i32_12 = arith.constant 0 : i32
    %23 = arith.cmpi eq, %arg2, %c0_i32_12 : i32
    %24 = arith.andi %22, %23 : i1
    %25 = arith.extui %24 : i1 to i32
    %c0_i32_13 = arith.constant 0 : i32
    %26 = arith.cmpi ne, %25, %c0_i32_13 : i32
    scf.if %26 {
      %c0_14 = arith.constant 0 : index
      %c0_15 = arith.constant 0 : index
      %27 = vector.load %arg7[%c0_14, %c0_15] : memref<128x128xf32, #tpu.memory_space<vmem>>, vector<128x128xf32>
      %cst_16 = arith.constant 0.000000e+00 : f32
      %28 = vector.broadcast %cst_16 : f32 to vector<128x128xf32>
      %29 = arith.maximumf %27, %28 : vector<128x128xf32>
      %c0_17 = arith.constant 0 : index
      %c0_18 = arith.constant 0 : index
      %30 = vector.load %arg7[%c0_17, %c0_18] : memref<128x128xf32, #tpu.memory_space<vmem>>, vector<128x128xf32>
      tpu.vector_store %arg7[%c0_17, %c0_18], %29 {strides = array<i32>} : memref<128x128xf32, #tpu.memory_space<vmem>>, vector<128x128xf32>,
    } else {
    }
    return
  }
  func.func @transform_0(%arg0: i32, %arg1: i32, %arg2: i32) -> (i32, i32) {
    %c0_i32 = arith.constant 0 : i32
    %c0_i32_0 = arith.constant 0 : i32
    return %arg0, %c0_i32 : i32, i32
  }
  func.func @transform_1(%arg0: i32, %arg1: i32, %arg2: i32) -> (i32, i32, i32) {
    %c0_i32 = arith.constant 0 : i32
    return %arg1, %arg0, %arg2 : i32, i32, i32
  }
  func.func @transform_2(%arg0: i32, %arg1: i32, %arg2: i32) -> (i32, i32, i32) {
    %c0_i32 = arith.constant 0 : i32
    %c0_i32_0 = arith.constant 0 : i32
    return %arg1, %arg0, %c0_i32 : i32, i32, i32
  }
  func.func @transform_3(%arg0: i32, %arg1: i32, %arg2: i32) -> (i32, i32, i32) {
    %c0_i32 = arith.constant 0 : i32
    %c0_i32_0 = arith.constant 0 : i32
    %c0_i32_1 = arith.constant 0 : i32
    %c0_i32_2 = arith.constant 0 : i32
    return %c0_i32, %c0_i32_0, %c0_i32_1 : i32, i32, i32
  }
  func.func @transform_4(%arg0: i32, %arg1: i32, %arg2: i32) -> (i32, i32) {
    %c0_i32 = arith.constant 0 : i32
    %c0_i32_0 = arith.constant 0 : i32
    return %arg0, %c0_i32 : i32, i32
  }
}

</mosaic_0001>

<llo_original>
// kernel: rgcn_forward.2
$region0: #{rgcn_forward.2}
  #allocation0 [shape = 'u32[]', space=smem, size = 0x4, offset = 0x4, fixed_abs, tag = 'smem constant byte address 0x4 - core index']
  #allocation1 [shape = 'u32[144,128]{1,0:T(1,128)}', space=vmem, size = 0x12000, scoped, tag = 'internal scratch']
  %s0 = inlined_call_operand.vmem [shape: f32[128,128], index: 0, kind: input, shape index: {}]
  %s1 = inlined_call_operand.vmem [shape: s8[3,128,128], index: 1, kind: input, shape index: {}]
  %s2 = inlined_call_operand.vmem [shape: f32[3,128,1], index: 2, kind: input, shape index: {}]
  %s3 = inlined_call_operand.vmem [shape: bf16[3,128,128], index: 3, kind: input, shape index: {}]
  %s4 = inlined_call_operand.vmem [shape: f32[128,128], index: 4, kind: output, shape index: {}]
  %s5 = sld [smem:[#allocation0]]
  $region57: #{rgcn_forward.2} parent=0
    _
  %s7 = ssub.s32 1, %s5
  %s8 = scalar_select 0, %s7, %s5
  loop: start=0, step=1, limit=5
  $region2: #{rgcn_forward.2} parent=0 // loop_pre_header
    _
  $region3: #{rgcn_forward.2} parent=0 // loop_header
    %s10 = sphi 0, %s14
    %p11 = scmp.ge.s32.totalorder %s10, 5
    %s17 = sphi 0, %s36
    %s18 = sphi 0, %s32
    %s19 = sphi 0, %s28
    %s20 = sphi 0, %s17
    %s21 = sphi 0, %s18
    %s22 = sphi 0, %s19
    %s23 = sphi 0, %s20
    %s24 = sphi 0, %s21
    %s25 = sphi 0, %s22
    %s39 = sphi 0, %s41
    %s42 = sphi 0, %s39
    %s43 = sphi 0, %s42
    %s59 = sphi 0, %s43
    %s69 = sphi 0, %s71
    %s72 = sphi 0, %s69
    %s73 = sphi 0, %s72
    %s89 = sphi 0, %s73
    %s97 = sphi 0, %s99
    %s100 = sphi 0, %s97
    %s101 = sphi 0, %s100
    %s117 = sphi 0, %s101
    %s121 = sphi 0, %s121
    %s123 = sphi 0, %s121
    %s124 = sphi 0, %s123
    %s138 = sphi 0, %s124
    %s144 = sphi 0, %s146
    %s147 = sphi 0, %s144
    %s148 = sphi 0, %s147
    %s164 = sphi 0, %s148
  $region4: #{rgcn_forward.2} parent=0 // loop_header_branch
    %13 = sbr.rel (%p11) target = $region8
  $region5: #{rgcn_forward.2} parent=0 // loop_body
    %s15 = ssub.s32 %s10, 1
    %s16 = ssub.s32 %s10, 2
    %s26 = sadd.s32 1, %s19
    %p27 = scmp.ge.s32.totalorder %s26, 1
    %s28 = scalar_select %p27, 0, %s26
    %s29 = sadd.s32 1, %s18
    %s30 = scalar_select %p27, %s29, %s18
    %p31 = scmp.ge.s32.totalorder %s30, 3
    %s32 = scalar_select %p31, 0, %s30
    %s33 = sadd.s32 1, %s17
    %s34 = scalar_select %p31, %s33, %s17
    %p35 = scmp.ge.s32.totalorder %s34, 1
    %s36 = scalar_select %p35, 0, %s34
    %s37 = ssub.s32 %s17, %s36
    %p38 = scmp.eq.s32.totalorder %s37, 0
    %s40 = sadd.s32 %s39, 1
    %s41 = scalar_select %p38, %s39, %s40
    %p44 = pneg %p38
    %p45 = scmp.eq.s32.totalorder %s10, 2
    %p46 = por %p44, %p45
    %p47 = scmp.ne.s32.totalorder %s39, %s42
    %p48 = scmp.eq.s32.totalorder %s10, 0
    %p49 = por %p47, %p48
    %p50 = scmp.ne.s32.totalorder %s39, %s42
    %p51 = scmp.eq.s32.totalorder %s15, 2
    %p52 = por %p50, %p51
    %p53 = scmp.ne.s32.totalorder %s42, %s43
    %p54 = scmp.eq.s32.totalorder %s15, 0
    %p55 = por %p53, %p54
    %p56 = scmp.ne.s32.totalorder %s42, %s43
    %p57 = scmp.eq.s32.totalorder %s16, 2
    %p58 = por %p56, %p57
    %p60 = scmp.ne.s32.totalorder %s43, %s59
    %p61 = scmp.eq.s32.totalorder %s16, 0
    %p62 = por %p60, %p61
    %s63 = ssub.s32 %s18, %s32
    %s64 = ssub.s32 %s17, %s36
    %s65 = sor.u32 %s63, %s64
    %s66 = ssub.s32 %s19, %s28
    %s67 = sor.u32 %s65, %s66
    %p68 = scmp.eq.s32.totalorder %s67, 0
    %s70 = sadd.s32 %s69, 1
    %s71 = scalar_select %p68, %s69, %s70
    %p74 = pneg %p68
    %p75 = scmp.eq.s32.totalorder %s10, 2
    %p76 = por %p74, %p75
    %p77 = scmp.ne.s32.totalorder %s69, %s72
    %p78 = scmp.eq.s32.totalorder %s10, 0
    %p79 = por %p77, %p78
    %p80 = scmp.ne.s32.totalorder %s69, %s72
    %p81 = scmp.eq.s32.totalorder %s15, 2
    %p82 = por %p80, %p81
    %p83 = scmp.ne.s32.totalorder %s72, %s73
    %p84 = scmp.eq.s32.totalorder %s15, 0
    %p85 = por %p83, %p84
    %p86 = scmp.ne.s32.totalorder %s72, %s73
    %p87 = scmp.eq.s32.totalorder %s16, 2
    %p88 = por %p86, %p87
    %p90 = scmp.ne.s32.totalorder %s73, %s89
    %p91 = scmp.eq.s32.totalorder %s16, 0
    %p92 = por %p90, %p91
    %s93 = ssub.s32 %s18, %s32
    %s94 = ssub.s32 %s17, %s36
    %s95 = sor.u32 %s93, %s94
    %p96 = scmp.eq.s32.totalorder %s95, 0
    %s98 = sadd.s32 %s97, 1
    %s99 = scalar_select %p96, %s97, %s98
    %p102 = pneg %p96
    %p103 = scmp.eq.s32.totalorder %s10, 2
    %p104 = por %p102, %p103
    %p105 = scmp.ne.s32.totalorder %s97, %s100
    %p106 = scmp.eq.s32.totalorder %s10, 0
    %p107 = por %p105, %p106
    %p108 = scmp.ne.s32.totalorder %s97, %s100
    %p109 = scmp.eq.s32.totalorder %s15, 2
    %p110 = por %p108, %p109
    %p111 = scmp.ne.s32.totalorder %s100, %s101
    %p112 = scmp.eq.s32.totalorder %s15, 0
    %p113 = por %p111, %p112
    %p114 = scmp.ne.s32.totalorder %s100, %s101
    %p115 = scmp.eq.s32.totalorder %s16, 2
    %p116 = por %p114, %p115
    %p118 = scmp.ne.s32.totalorder %s101, %s117
    %p119 = scmp.eq.s32.totalorder %s16, 0
    %p120 = por %p118, %p119
    %s122 = sadd.s32 %s121, 1
    %p125 = scmp.eq.s32.totalorder %s10, 2
    %p126 = scmp.ne.s32.totalorder %s121, %s123
    %p127 = scmp.eq.s32.totalorder %s10, 0
    %p128 = por %p126, %p127
    %p129 = scmp.ne.s32.totalorder %s121, %s123
    %p130 = scmp.eq.s32.totalorder %s15, 2
    %p131 = por %p129, %p130
    %p132 = scmp.ne.s32.totalorder %s123, %s124
    %p133 = scmp.eq.s32.totalorder %s15, 0
    %p134 = por %p132, %p133
    %p135 = scmp.ne.s32.totalorder %s123, %s124
    %p136 = scmp.eq.s32.totalorder %s16, 2
    %p137 = por %p135, %p136
    %p139 = scmp.ne.s32.totalorder %s124, %s138
    %p140 = scmp.eq.s32.totalorder %s16, 0
    %p141 = por %p139, %p140
    %s142 = ssub.s32 %s17, %s36
    %p143 = scmp.eq.s32.totalorder %s142, 0
    %s145 = sadd.s32 %s144, 1
    %s146 = scalar_select %p143, %s144, %s145
    %p149 = pneg %p143
    %p150 = scmp.eq.s32.totalorder %s10, 2
    %p151 = por %p149, %p150
    %p152 = scmp.ne.s32.totalorder %s144, %s147
    %p153 = scmp.eq.s32.totalorder %s10, 0
    %p154 = por %p152, %p153
    %p155 = scmp.ne.s32.totalorder %s144, %s147
    %p156 = scmp.eq.s32.totalorder %s15, 2
    %p157 = por %p155, %p156
    %p158 = scmp.ne.s32.totalorder %s147, %s148
    %p159 = scmp.eq.s32.totalorder %s15, 0
    %p160 = por %p158, %p159
    %p161 = scmp.ne.s32.totalorder %s147, %s148
    %p162 = scmp.eq.s32.totalorder %s16, 2
    %p163 = por %p161, %p162
    %p165 = scmp.ne.s32.totalorder %s148, %s164
    %p166 = scmp.eq.s32.totalorder %s16, 0
    %p167 = por %p165, %p166
    %p168 = scmp.le.s32.totalorder 1, %s10
    %p169 = scmp.lt.s32.totalorder %s10, 4
    %p170 = pnand %p168, %p169
    %p171 = pneg %p170
    // Predicated region
    $region9: #{rgcn_forward.2} parent=5 // pred_check
      _
    $region10: #{rgcn_forward.2} parent=5 // pred_check_branch
      %173 = sbr.rel (%p170) target = $region12
    $region11: #{rgcn_forward.2} parent=5 // pred_region
      %s174 = ssub.s32 %s10, 1
      // Predicated region
      $region13: #{rgcn_forward.2} parent=11 // pred_check
        %p175 = pneg %p55
      $region14: #{rgcn_forward.2} parent=11 // pred_check_branch
        %177 = sbr.rel (%p175) target = $region16
      $region15: #{rgcn_forward.2} parent=11 // pred_region
        %s178 = smul.u32 16, %s20
        %p179 = scmp.lt.s32.totalorder %s178, 15
        %s180 = scalar_select %p179, %s178, 15
        %s181 = smul.addr %s180, 8
        %s182 = scalar_lea.vmem %s0, %s181
        %s183 = smul.u32 16, %s20
      $region16: #{rgcn_forward.2} parent=11 // pred_fallthru
        _
      // Predicated region
      $region17: #{rgcn_forward.2} parent=11 // pred_check
        %p184 = pneg %p134
      $region18: #{rgcn_forward.2} parent=11 // pred_check_branch
        %186 = sbr.rel (%p184) target = $region20
      $region19: #{rgcn_forward.2} parent=11 // pred_region
        _
      $region20: #{rgcn_forward.2} parent=11 // pred_fallthru
        _
    $region12: #{rgcn_forward.2} parent=5 // pred_fallthru
      _
    %p187 = scmp.lt.s32.totalorder %s10, 3
    // Predicated region
    $region21: #{rgcn_forward.2} parent=5 // pred_check
      %p188 = pneg %p187
    $region22: #{rgcn_forward.2} parent=5 // pred_check_branch
      %190 = sbr.rel (%p188) target = $region24
    $region23: #{rgcn_forward.2} parent=5 // pred_region
      // Predicated region
      $region25: #{rgcn_forward.2} parent=23 // pred_check
        %p191 = pneg %p79
      $region26: #{rgcn_forward.2} parent=23 // pred_check_branch
        %193 = sbr.rel (%p191) target = $region28
      $region27: #{rgcn_forward.2} parent=23 // pred_region
        %s194 = smul.u32 4, %s17
        %p195 = scmp.lt.s32.totalorder %s18, 2
        %s196 = scalar_select %p195, %s18, 2
        %p197 = scmp.lt.s32.totalorder %s194, 3
        %s198 = scalar_select %p197, %s194, 3
        %p199 = scmp.lt.s32.totalorder %s19, 0
        %s200 = scalar_select %p199, %s19, 0
        %s201 = sadd.s32 %s200, %s198
        %s202 = smul.addr %s196, 4
        %s203 = sadd.s32 %s201, %s202
        %s204 = smul.addr %s203, 8
        %s205 = scalar_lea.vmem %s1, %s204
        %s206 = smul.u32 4, %s17
      $region28: #{rgcn_forward.2} parent=23 // pred_fallthru
        _
      // Predicated region
      $region29: #{rgcn_forward.2} parent=23 // pred_check
        %p207 = pneg %p107
      $region30: #{rgcn_forward.2} parent=23 // pred_check_branch
        %209 = sbr.rel (%p207) target = $region32
      $region31: #{rgcn_forward.2} parent=23 // pred_region
        %s210 = smul.u32 16, %s17
        %p211 = scmp.lt.s32.totalorder %s18, 2
        %s212 = scalar_select %p211, %s18, 2
        %p213 = scmp.lt.s32.totalorder %s210, 15
        %s214 = scalar_select %p213, %s210, 15
        %s215 = smul.addr %s212, 16
        %s216 = sadd.s32 %s214, %s215
        %s217 = smul.addr %s216, 8
        %s218 = scalar_lea.vmem %s2, %s217
        %s219 = smul.u32 16, %s17
      $region32: #{rgcn_forward.2} parent=23 // pred_fallthru
        _
    $region24: #{rgcn_forward.2} parent=5 // pred_fallthru
      _
    %p220 = scmp.le.s32.totalorder 1, %s10
    %p221 = scmp.lt.s32.totalorder %s10, 4
    %p222 = pnand %p220, %p221
    %p223 = pneg %p222
    // Predicated region
    $region33: #{rgcn_forward.2} parent=5 // pred_check
      _
    $region34: #{rgcn_forward.2} parent=5 // pred_check_branch
      %225 = sbr.rel (%p222) target = $region36
    $region35: #{rgcn_forward.2} parent=5 // pred_region
      %s226 = ssub.s32 %s10, 1
      %s227 = smul.u32 16, %s20
      %p228 = scmp.lt.s32.totalorder %s227, 15
      %s229 = scalar_select %p228, %s227, 15
      %s230 = smul.addr %s229, 8
      %s231 = scalar_lea.vmem %s0, %s230
      %p232 = pneg %p55
      %p233 = pneg %p52
      %s234 = smul.u32 4, %s20
      %p235 = scmp.lt.s32.totalorder %s21, 2
      %s236 = scalar_select %p235, %s21, 2
      %p237 = scmp.lt.s32.totalorder %s234, 3
      %s238 = scalar_select %p237, %s234, 3
      %p239 = scmp.lt.s32.totalorder %s22, 0
      %s240 = scalar_select %p239, %s22, 0
      %s241 = sadd.s32 %s240, %s238
      %s242 = smul.addr %s236, 4
      %s243 = sadd.s32 %s241, %s242
      %s244 = smul.addr %s243, 8
      %s245 = scalar_lea.vmem %s1, %s244
      %p246 = pneg %p85
      %p247 = pneg %p82
      %s248 = smul.u32 16, %s20
      %p249 = scmp.lt.s32.totalorder %s21, 2
      %s250 = scalar_select %p249, %s21, 2
      %p251 = scmp.lt.s32.totalorder %s248, 15
      %s252 = scalar_select %p251, %s248, 15
      %s253 = smul.addr %s250, 16
      %s254 = sadd.s32 %s252, %s253
      %s255 = smul.addr %s254, 8
      %s256 = scalar_lea.vmem %s2, %s255
      %p257 = pneg %p113
      %p258 = pneg %p110
      %p259 = pneg %p134
      %p260 = pneg %p131
      %p261 = pneg %p160
      %p262 = pneg %p157
      %s263 = smul.u32 16, %s20
      %p264 = scmp.lt.s32.totalorder %s263, 15
      %s265 = scalar_select %p264, %s263, 15
      %s266 = smul.addr %s265, 8
      %s267 = scalar_lea.vmem %s4, %s266
      %s268 = smul.u32 16, %s20
      %p269 = scmp.lt.s32.totalorder %s268, 15
      %s270 = scalar_select %p269, %s268, 15
      %s271 = smul.addr %s270, 8
      %s272 = scalar_lea.vmem %s0, %s271
      %s273 = smul.u32 16, %s20
      %s274 = smul.u32 4, %s20
      %p275 = scmp.lt.s32.totalorder %s21, 2
      %s276 = scalar_select %p275, %s21, 2
      %p277 = scmp.lt.s32.totalorder %s274, 3
      %s278 = scalar_select %p277, %s274, 3
      %p279 = scmp.lt.s32.totalorder %s22, 0
      %s280 = scalar_select %p279, %s22, 0
      %s281 = sadd.s32 %s280, %s278
      %s282 = smul.addr %s276, 4
      %s283 = sadd.s32 %s281, %s282
      %s284 = smul.addr %s283, 8
      %s285 = scalar_lea.vmem %s1, %s284
      %s286 = smul.u32 4, %s20
      %s287 = smul.u32 16, %s20
      %p288 = scmp.lt.s32.totalorder %s21, 2
      %s289 = scalar_select %p288, %s21, 2
      %p290 = scmp.lt.s32.totalorder %s287, 15
      %s291 = scalar_select %p290, %s287, 15
      %s292 = smul.addr %s289, 16
      %s293 = sadd.s32 %s291, %s292
      %s294 = smul.addr %s293, 8
      %s295 = scalar_lea.vmem %s2, %s294
      %s296 = smul.u32 16, %s20
      %s297 = smul.u32 16, %s20
      %p298 = scmp.lt.s32.totalorder %s297, 15
      %s299 = scalar_select %p298, %s297, 15
      %s300 = smul.addr %s299, 8
      %s301 = scalar_lea.vmem %s4, %s300
      %s302 = smul.u32 16, %s20
      %p304 = scmp.eq.s32.totalorder %s21, 0
      %p305 = scmp.eq.s32.totalorder %s22, 0
      %p306 = pnand %p304, %p305
      %p307 = pneg %p306
      // Predicated region
      $region37: #{rgcn_forward.2} parent=35 // pred_check
        _
      $region38: #{rgcn_forward.2} parent=35 // pred_check_branch
        %309 = sbr.rel (%p306) target = $region40
      $region39: #{rgcn_forward.2} parent=35 // pred_region
        %v310 = vld [vmem:[%s272] sm:$0xff]
        %v311 = vld [vmem:[%s272 + $0x8] sm:$0xff]
        %v312 = vld [vmem:[%s272 + $0x10] sm:$0xff]
        %v313 = vld [vmem:[%s272 + $0x18] sm:$0xff]
        %v314 = vld [vmem:[%s272 + $0x20] sm:$0xff]
        %v315 = vld [vmem:[%s272 + $0x28] sm:$0xff]
        %v316 = vld [vmem:[%s272 + $0x30] sm:$0xff]
        %v317 = vld [vmem:[%s272 + $0x38] sm:$0xff]
        %v318 = vld [vmem:[%s272 + $0x40] sm:$0xff]
        %v319 = vld [vmem:[%s272 + $0x48] sm:$0xff]
        %v320 = vld [vmem:[%s272 + $0x50] sm:$0xff]
        %v321 = vld [vmem:[%s272 + $0x58] sm:$0xff]
        %v322 = vld [vmem:[%s272 + $0x60] sm:$0xff]
        %v323 = vld [vmem:[%s272 + $0x68] sm:$0xff]
        %v324 = vld [vmem:[%s272 + $0x70] sm:$0xff]
        %v325 = vld [vmem:[%s272 + $0x78] sm:$0xff]
        %326 = vst [vmem:[%s301] sm:$0xff] %v310
        %327 = vst [vmem:[%s301 + $0x8] sm:$0xff] %v311
        %328 = vst [vmem:[%s301 + $0x10] sm:$0xff] %v312
        %329 = vst [vmem:[%s301 + $0x18] sm:$0xff] %v313
        %330 = vst [vmem:[%s301 + $0x20] sm:$0xff] %v314
        %331 = vst [vmem:[%s301 + $0x28] sm:$0xff] %v315
        %332 = vst [vmem:[%s301 + $0x30] sm:$0xff] %v316
        %333 = vst [vmem:[%s301 + $0x38] sm:$0xff] %v317
        %334 = vst [vmem:[%s301 + $0x40] sm:$0xff] %v318
        %335 = vst [vmem:[%s301 + $0x48] sm:$0xff] %v319
        %336 = vst [vmem:[%s301 + $0x50] sm:$0xff] %v320
        %337 = vst [vmem:[%s301 + $0x58] sm:$0xff] %v321
        %338 = vst [vmem:[%s301 + $0x60] sm:$0xff] %v322
        %339 = vst [vmem:[%s301 + $0x68] sm:$0xff] %v323
        %340 = vst [vmem:[%s301 + $0x70] sm:$0xff] %v324
        %341 = vst [vmem:[%s301 + $0x78] sm:$0xff] %v325
      $region40: #{rgcn_forward.2} parent=35 // pred_fallthru
        _
      %v342 = vld [vmem:[%s285] sm:$0xff]
      %v343 = vld [vmem:[%s285 + $0x8] sm:$0xff]
      %v344 = vld [vmem:[%s285 + $0x10] sm:$0xff]
      %v345 = vld [vmem:[%s285 + $0x18] sm:$0xff]
      %v346 = vunpack.c.l.s8.bf16 %v342
      %v347 = vunpack.c.h.s8.bf16 %v342
      %v348 = vunpack.c.l.s8.bf16 %v343
      %v349 = vunpack.c.h.s8.bf16 %v343
      %v350 = vunpack.c.l.s8.bf16 %v344
      %v351 = vunpack.c.h.s8.bf16 %v344
      %v352 = vunpack.c.l.s8.bf16 %v345
      %v353 = vunpack.c.h.s8.bf16 %v345
      %s354 = smul.u32 %s22, 128
      %s355 = sshra.s32 %s354, 3
      %s356 = sand.u32 %s354, 7
      %s357 = smul.u32 %s21, 16
      %s358 = sadd.s32 %s355, %s357
      %s359 = smul.addr %s358, 4
      %s360 = scalar_lea.vmem %s3, %s359
      %v361 = vld [vmem:[%s360] sm:$0xf]
      %v362 = vld [vmem:[%s360 + $0x4] sm:$0xf]
      %v363 = vld [vmem:[%s360 + $0x8] sm:$0xf]
      %v364 = vld [vmem:[%s360 + $0xc] sm:$0xf]
      %v365 = vld [vmem:[%s360 + $0x10] sm:$0xf]
      %v366 = vld [vmem:[%s360 + $0x14] sm:$0xf]
      %v367 = vld [vmem:[%s360 + $0x18] sm:$0xf]
      %v368 = vld [vmem:[%s360 + $0x1c] sm:$0xf]
      %v369 = vld [vmem:[%s360 + $0x20] sm:$0xf]
      %v370 = vld [vmem:[%s360 + $0x24] sm:$0xf]
      %v371 = vld [vmem:[%s360 + $0x28] sm:$0xf]
      %v372 = vld [vmem:[%s360 + $0x2c] sm:$0xf]
      %v373 = vld [vmem:[%s360 + $0x30] sm:$0xf]
      %v374 = vld [vmem:[%s360 + $0x34] sm:$0xf]
      %v375 = vld [vmem:[%s360 + $0x38] sm:$0xf]
      %v376 = vld [vmem:[%s360 + $0x3c] sm:$0xf]
      %v393 = vunpack.c.l.b16 %v361
      %v394 = vunpack.c.l.b16 %v362
      %v395 = vunpack.c.l.b16 %v363
      %v396 = vunpack.c.l.b16 %v364
      %v397 = vunpack.c.l.b16 %v365
      %v398 = vunpack.c.l.b16 %v366
      %v399 = vunpack.c.l.b16 %v367
      %v400 = vunpack.c.l.b16 %v368
      %v401 = vunpack.c.l.b16 %v369
      %v402 = vunpack.c.l.b16 %v370
      %v403 = vunpack.c.l.b16 %v371
      %v404 = vunpack.c.l.b16 %v372
      %v405 = vunpack.c.l.b16 %v373
      %v406 = vunpack.c.l.b16 %v374
      %v407 = vunpack.c.l.b16 %v375
      %v408 = vunpack.c.l.b16 %v376
      %v409 = vpack.c.b16 %v394, %v393
      %v410 = vpack.c.b16 %v396, %v395
      %v411 = vpack.c.b16 %v398, %v397
      %v412 = vpack.c.b16 %v400, %v399
      %v413 = vpack.c.b16 %v402, %v401
      %v414 = vpack.c.b16 %v404, %v403
      %v415 = vpack.c.b16 %v406, %v405
      %v416 = vpack.c.b16 %v408, %v407
      %425 = vmatprep.subr.bf16.mxu0 0
      %426 = vmatpush1.bf16.msra.mxu0 %v409
      %427 = vmatprep.subr.bf16.mxu0 0
      %428 = vmatpush1.bf16.msra.mxu0 %v410
      %429 = vmatprep.subr.bf16.mxu0 0
      %430 = vmatpush1.bf16.msra.mxu0 %v411
      %431 = vmatprep.subr.bf16.mxu0 0
      %432 = vmatpush1.bf16.msra.mxu0 %v412
      %433 = vmatprep.subr.bf16.mxu0 0
      %434 = vmatpush1.bf16.msra.mxu0 %v413
      %435 = vmatprep.subr.bf16.mxu0 0
      %436 = vmatpush1.bf16.msra.mxu0 %v414
      %437 = vmatprep.subr.bf16.mxu0 0
      %438 = vmatpush1.bf16.msra.mxu0 %v415
      %439 = vmatprep.subr.bf16.mxu0 0
      %440 = vmatpush1.bf16.msra.mxu0 %v416
      %441 = vmatprep.subr.bf16.mxu0 0
      %442 = vmatpush1.bf16.msra.mxu0 0
      %443 = vmatprep.subr.bf16.mxu0 0
      %444 = vmatpush1.bf16.msra.mxu0 0
      %445 = vmatprep.subr.bf16.mxu0 0
      %446 = vmatpush1.bf16.msra.mxu0 0
      %447 = vmatprep.subr.bf16.mxu0 0
      %448 = vmatpush1.bf16.msra.mxu0 0
      %449 = vmatprep.subr.bf16.mxu0 0
      %450 = vmatpush1.bf16.msra.mxu0 0
      %451 = vmatprep.subr.bf16.mxu0 0
      %452 = vmatpush1.bf16.msra.mxu0 0
      %453 = vmatprep.subr.bf16.mxu0 0
      %454 = vmatpush1.bf16.msra.mxu0 0
      %455 = vmatprep.subr.bf16.mxu0 0
      %456 = vmatpush1.bf16.msra.mxu0 0
      %457 = vmatprep.mubr.bf16.mxu0 0
      %458 = vmatmul.mubr.bf16.gmra.mrb[0].mxu0 %v346
      %v459 = vpop.f32.mrb[0].mxu0
      %v460 = vadd.f32 0.0, %v459
      %v461 = vpop.f32.mrb[0].mxu0
      %v462 = vpop.f32.mrb[0].mxu0
      %v463 = vadd.f32 0.0, %v462
      %v464 = vpop.f32.mrb[0].mxu0
      %465 = vmatprep.mubr.bf16.mxu0 0
      %466 = vmatmul.mubr.bf16.gmra.mrb[0].mxu0 %v347
      %v467 = vpop.f32.mrb[0].mxu0
      %v468 = vadd.f32 0.0, %v467
      %v469 = vpop.f32.mrb[0].mxu0
      %v470 = vpop.f32.mrb[0].mxu0
      %v471 = vadd.f32 0.0, %v470
      %v472 = vpop.f32.mrb[0].mxu0
      %473 = vmatprep.mubr.bf16.mxu0 0
      %474 = vmatmul.mubr.bf16.gmra.mrb[0].mxu0 %v348
      %v475 = vpop.f32.mrb[0].mxu0
      %v476 = vadd.f32 0.0, %v475
      %v477 = vpop.f32.mrb[0].mxu0
      %v478 = vpop.f32.mrb[0].mxu0
      %v479 = vadd.f32 0.0, %v478
      %v480 = vpop.f32.mrb[0].mxu0
      %481 = vmatprep.mubr.bf16.mxu0 0
      %482 = vmatmul.mubr.bf16.gmra.mrb[0].mxu0 %v349
      %v483 = vpop.f32.mrb[0].mxu0
      %v484 = vadd.f32 0.0, %v483
      %v485 = vpop.f32.mrb[0].mxu0
      %v486 = vpop.f32.mrb[0].mxu0
      %v487 = vadd.f32 0.0, %v486
      %v488 = vpop.f32.mrb[0].mxu0
      %489 = vmatprep.mubr.bf16.mxu0 0
      %490 = vmatmul.mubr.bf16.gmra.mrb[0].mxu0 %v350
      %v491 = vpop.f32.mrb[0].mxu0
      %v492 = vadd.f32 0.0, %v491
      %v493 = vpop.f32.mrb[0].mxu0
      %v494 = vpop.f32.mrb[0].mxu0
      %v495 = vadd.f32 0.0, %v494
      %v496 = vpop.f32.mrb[0].mxu0
      %497 = vmatprep.mubr.bf16.mxu0 0
      %498 = vmatmul.mubr.bf16.gmra.mrb[0].mxu0 %v351
      %v499 = vpop.f32.mrb[0].mxu0
      %v500 = vadd.f32 0.0, %v499
      %v501 = vpop.f32.mrb[0].mxu0
      %v502 = vpop.f32.mrb[0].mxu0
      %v503 = vadd.f32 0.0, %v502
      %v504 = vpop.f32.mrb[0].mxu0
      %505 = vmatprep.mubr.bf16.mxu0 0
      %506 = vmatmul.mubr.bf16.gmra.mrb[0].mxu0 %v352
      %v507 = vpop.f32.mrb[0].mxu0
      %v508 = vadd.f32 0.0, %v507
      %v509 = vpop.f32.mrb[0].mxu0
      %v510 = vpop.f32.mrb[0].mxu0
      %v511 = vadd.f32 0.0, %v510
      %v512 = vpop.f32.mrb[0].mxu0
      %513 = vmatprep.mubr.bf16.mxu0 0
      %514 = vmatmul.mubr.bf16.gmra.mrb[0].mxu0 %v353
      %v515 = vpop.f32.mrb[0].mxu0
      %v516 = vadd.f32 0.0, %v515
      %v517 = vpop.f32.mrb[0].mxu0
      %v518 = vpop.f32.mrb[0].mxu0
      %v519 = vadd.f32 0.0, %v518
      %v520 = vpop.f32.mrb[0].mxu0
      %521 = vdwg.mxu0
      %v522 = vld [vmem:[%s301] sm:$0xff]
      %v523 = vld [vmem:[%s301 + $0x8] sm:$0xff]
      %v524 = vld [vmem:[%s301 + $0x10] sm:$0xff]
      %v525 = vld [vmem:[%s301 + $0x18] sm:$0xff]
      %v526 = vld [vmem:[%s301 + $0x20] sm:$0xff]
      %v527 = vld [vmem:[%s301 + $0x28] sm:$0xff]
      %v528 = vld [vmem:[%s301 + $0x30] sm:$0xff]
      %v529 = vld [vmem:[%s301 + $0x38] sm:$0xff]
      %v530 = vld [vmem:[%s301 + $0x40] sm:$0xff]
      %v531 = vld [vmem:[%s301 + $0x48] sm:$0xff]
      %v532 = vld [vmem:[%s301 + $0x50] sm:$0xff]
      %v533 = vld [vmem:[%s301 + $0x58] sm:$0xff]
      %v534 = vld [vmem:[%s301 + $0x60] sm:$0xff]
      %v535 = vld [vmem:[%s301 + $0x68] sm:$0xff]
      %v536 = vld [vmem:[%s301 + $0x70] sm:$0xff]
      %v537 = vld [vmem:[%s301 + $0x78] sm:$0xff]
      %v538 = vld [vmem:[%s295] sm:$0xff]
      %v539 = vld [vmem:[%s295 + $0x8] sm:$0xff]
      %v540 = vld [vmem:[%s295 + $0x10] sm:$0xff]
      %v541 = vld [vmem:[%s295 + $0x18] sm:$0xff]
      %v542 = vld [vmem:[%s295 + $0x20] sm:$0xff]
      %v543 = vld [vmem:[%s295 + $0x28] sm:$0xff]
      %v544 = vld [vmem:[%s295 + $0x30] sm:$0xff]
      %v545 = vld [vmem:[%s295 + $0x38] sm:$0xff]
      %v546 = vld [vmem:[%s295 + $0x40] sm:$0xff]
      %v547 = vld [vmem:[%s295 + $0x48] sm:$0xff]
      %v548 = vld [vmem:[%s295 + $0x50] sm:$0xff]
      %v549 = vld [vmem:[%s295 + $0x58] sm:$0xff]
      %v550 = vld [vmem:[%s295 + $0x60] sm:$0xff]
      %v551 = vld [vmem:[%s295 + $0x68] sm:$0xff]
      %v552 = vld [vmem:[%s295 + $0x70] sm:$0xff]
      %v553 = vld [vmem:[%s295 + $0x78] sm:$0xff]
      %555 = vset.pattern.permute.xlu0 0
      %556 = vperm.xlu0 %555, %v538
      %v557 = vpop.permute.xlu0 %556
      %560 = vset.pattern.permute.xlu0 0
      %561 = vperm.xlu0 %560, %v539
      %v562 = vpop.permute.xlu0 %561
      %565 = vset.pattern.permute.xlu0 0
      %566 = vperm.xlu0 %565, %v540
      %v567 = vpop.permute.xlu0 %566
      %570 = vset.pattern.permute.xlu0 0
      %571 = vperm.xlu0 %570, %v541
      %v572 = vpop.permute.xlu0 %571
      %575 = vset.pattern.permute.xlu0 0
      %576 = vperm.xlu0 %575, %v542
      %v577 = vpop.permute.xlu0 %576
      %580 = vset.pattern.permute.xlu0 0
      %581 = vperm.xlu0 %580, %v543
      %v582 = vpop.permute.xlu0 %581
      %585 = vset.pattern.permute.xlu0 0
      %586 = vperm.xlu0 %585, %v544
      %v587 = vpop.permute.xlu0 %586
      %590 = vset.pattern.permute.xlu0 0
      %591 = vperm.xlu0 %590, %v545
      %v592 = vpop.permute.xlu0 %591
      %595 = vset.pattern.permute.xlu0 0
      %596 = vperm.xlu0 %595, %v546
      %v597 = vpop.permute.xlu0 %596
      %600 = vset.pattern.permute.xlu0 0
      %601 = vperm.xlu0 %600, %v547
      %v602 = vpop.permute.xlu0 %601
      %605 = vset.pattern.permute.xlu0 0
      %606 = vperm.xlu0 %605, %v548
      %v607 = vpop.permute.xlu0 %606
      %610 = vset.pattern.permute.xlu0 0
      %611 = vperm.xlu0 %610, %v549
      %v612 = vpop.permute.xlu0 %611
      %615 = vset.pattern.permute.xlu0 0
      %616 = vperm.xlu0 %615, %v550
      %v617 = vpop.permute.xlu0 %616
      %620 = vset.pattern.permute.xlu0 0
      %621 = vperm.xlu0 %620, %v551
      %v622 = vpop.permute.xlu0 %621
      %625 = vset.pattern.permute.xlu0 0
      %626 = vperm.xlu0 %625, %v552
      %v627 = vpop.permute.xlu0 %626
      %630 = vset.pattern.permute.xlu0 0
      %631 = vperm.xlu0 %630, %v553
      %v632 = vpop.permute.xlu0 %631
      %v634 = vmul.f32 %v557, %v460
      %v635 = vmul.f32 %v562, %v463
      %v636 = vmul.f32 %v567, %v468
      %v637 = vmul.f32 %v572, %v471
      %v638 = vmul.f32 %v577, %v476
      %v639 = vmul.f32 %v582, %v479
      %v640 = vmul.f32 %v587, %v484
      %v641 = vmul.f32 %v592, %v487
      %v642 = vmul.f32 %v597, %v492
      %v643 = vmul.f32 %v602, %v495
      %v644 = vmul.f32 %v607, %v500
      %v645 = vmul.f32 %v612, %v503
      %v646 = vmul.f32 %v617, %v508
      %v647 = vmul.f32 %v622, %v511
      %v648 = vmul.f32 %v627, %v516
      %v649 = vmul.f32 %v632, %v519
      %v650 = vadd.f32 %v522, %v634
      %v651 = vadd.f32 %v523, %v635
      %v652 = vadd.f32 %v524, %v636
      %v653 = vadd.f32 %v525, %v637
      %v654 = vadd.f32 %v526, %v638
      %v655 = vadd.f32 %v527, %v639
      %v656 = vadd.f32 %v528, %v640
      %v657 = vadd.f32 %v529, %v641
      %v658 = vadd.f32 %v530, %v642
      %v659 = vadd.f32 %v531, %v643
      %v660 = vadd.f32 %v532, %v644
      %v661 = vadd.f32 %v533, %v645
      %v662 = vadd.f32 %v534, %v646
      %v663 = vadd.f32 %v535, %v647
      %v664 = vadd.f32 %v536, %v648
      %v665 = vadd.f32 %v537, %v649
      %666 = vst [vmem:[%s301] sm:$0xff] %v650
      %667 = vst [vmem:[%s301 + $0x8] sm:$0xff] %v651
      %668 = vst [vmem:[%s301 + $0x10] sm:$0xff] %v652
      %669 = vst [vmem:[%s301 + $0x18] sm:$0xff] %v653
      %670 = vst [vmem:[%s301 + $0x20] sm:$0xff] %v654
      %671 = vst [vmem:[%s301 + $0x28] sm:$0xff] %v655
      %672 = vst [vmem:[%s301 + $0x30] sm:$0xff] %v656
      %673 = vst [vmem:[%s301 + $0x38] sm:$0xff] %v657
      %674 = vst [vmem:[%s301 + $0x40] sm:$0xff] %v658
      %675 = vst [vmem:[%s301 + $0x48] sm:$0xff] %v659
      %676 = vst [vmem:[%s301 + $0x50] sm:$0xff] %v660
      %677 = vst [vmem:[%s301 + $0x58] sm:$0xff] %v661
      %678 = vst [vmem:[%s301 + $0x60] sm:$0xff] %v662
      %679 = vst [vmem:[%s301 + $0x68] sm:$0xff] %v663
      %680 = vst [vmem:[%s301 + $0x70] sm:$0xff] %v664
      %681 = vst [vmem:[%s301 + $0x78] sm:$0xff] %v665
      %p682 = scmp.eq.s32.totalorder %s21, 2
      %p683 = pnand %p682, %p305
      %p684 = pneg %p683
      // Predicated region
      $region41: #{rgcn_forward.2} parent=35 // pred_check
        _
      $region42: #{rgcn_forward.2} parent=35 // pred_check_branch
        %686 = sbr.rel (%p683) target = $region44
      $region43: #{rgcn_forward.2} parent=35 // pred_region
        %v687 = vld [vmem:[%s301] sm:$0xff]
        %v688 = vld [vmem:[%s301 + $0x8] sm:$0xff]
        %v689 = vld [vmem:[%s301 + $0x10] sm:$0xff]
        %v690 = vld [vmem:[%s301 + $0x18] sm:$0xff]
        %v691 = vld [vmem:[%s301 + $0x20] sm:$0xff]
        %v692 = vld [vmem:[%s301 + $0x28] sm:$0xff]
        %v693 = vld [vmem:[%s301 + $0x30] sm:$0xff]
        %v694 = vld [vmem:[%s301 + $0x38] sm:$0xff]
        %v695 = vld [vmem:[%s301 + $0x40] sm:$0xff]
        %v696 = vld [vmem:[%s301 + $0x48] sm:$0xff]
        %v697 = vld [vmem:[%s301 + $0x50] sm:$0xff]
        %v698 = vld [vmem:[%s301 + $0x58] sm:$0xff]
        %v699 = vld [vmem:[%s301 + $0x60] sm:$0xff]
        %v700 = vld [vmem:[%s301 + $0x68] sm:$0xff]
        %v701 = vld [vmem:[%s301 + $0x70] sm:$0xff]
        %v702 = vld [vmem:[%s301 + $0x78] sm:$0xff]
        %v703 = vmax.f32 %v687, 0.0
        %v704 = vmax.f32 %v688, 0.0
        %v705 = vmax.f32 %v689, 0.0
        %v706 = vmax.f32 %v690, 0.0
        %v707 = vmax.f32 %v691, 0.0
        %v708 = vmax.f32 %v692, 0.0
        %v709 = vmax.f32 %v693, 0.0
        %v710 = vmax.f32 %v694, 0.0
        %v711 = vmax.f32 %v695, 0.0
        %v712 = vmax.f32 %v696, 0.0
        %v713 = vmax.f32 %v697, 0.0
        %v714 = vmax.f32 %v698, 0.0
        %v715 = vmax.f32 %v699, 0.0
        %v716 = vmax.f32 %v700, 0.0
        %v717 = vmax.f32 %v701, 0.0
        %v718 = vmax.f32 %v702, 0.0
        %719 = vst [vmem:[%s301] sm:$0xff] %v703
        %720 = vst [vmem:[%s301 + $0x8] sm:$0xff] %v704
        %721 = vst [vmem:[%s301 + $0x10] sm:$0xff] %v705
        %722 = vst [vmem:[%s301 + $0x18] sm:$0xff] %v706
        %723 = vst [vmem:[%s301 + $0x20] sm:$0xff] %v707
        %724 = vst [vmem:[%s301 + $0x28] sm:$0xff] %v708
        %725 = vst [vmem:[%s301 + $0x30] sm:$0xff] %v709
        %726 = vst [vmem:[%s301 + $0x38] sm:$0xff] %v710
        %727 = vst [vmem:[%s301 + $0x40] sm:$0xff] %v711
        %728 = vst [vmem:[%s301 + $0x48] sm:$0xff] %v712
        %729 = vst [vmem:[%s301 + $0x50] sm:$0xff] %v713
        %730 = vst [vmem:[%s301 + $0x58] sm:$0xff] %v714
        %731 = vst [vmem:[%s301 + $0x60] sm:$0xff] %v715
        %732 = vst [vmem:[%s301 + $0x68] sm:$0xff] %v716
        %733 = vst [vmem:[%s301 + $0x70] sm:$0xff] %v717
        %734 = vst [vmem:[%s301 + $0x78] sm:$0xff] %v718
      $region44: #{rgcn_forward.2} parent=35 // pred_fallthru
        _
      %s735 = smul.u32 16, %s20
      %p736 = scmp.lt.s32.totalorder %s735, 15
      %s737 = scalar_select %p736, %s735, 15
      %s738 = smul.addr %s737, 8
      %s739 = scalar_lea.vmem %s4, %s738
      // Predicated region
      $region45: #{rgcn_forward.2} parent=35 // pred_check
        %p740 = pneg %p157
      $region46: #{rgcn_forward.2} parent=35 // pred_check_branch
        %742 = sbr.rel (%p740) target = $region48
      $region47: #{rgcn_forward.2} parent=35 // pred_region
        %s743 = smul.u32 16, %s20
      $region48: #{rgcn_forward.2} parent=35 // pred_fallthru
        _
      // Predicated region
      $region49: #{rgcn_forward.2} parent=35 // pred_check
        %p744 = pneg %p157
      $region50: #{rgcn_forward.2} parent=35 // pred_check_branch
        %746 = sbr.rel (%p744) target = $region52
      $region51: #{rgcn_forward.2} parent=35 // pred_region
        %s747 = smul.u32 16, %s20
        %p748 = scmp.lt.s32.totalorder %s747, 15
        %s749 = scalar_select %p748, %s747, 15
        %s750 = smul.addr %s749, 8
        %s751 = scalar_lea.vmem %s4, %s750
      $region52: #{rgcn_forward.2} parent=35 // pred_fallthru
        _
    $region36: #{rgcn_forward.2} parent=5 // pred_fallthru
      _
    %p752 = scmp.le.s32.totalorder 2, %s10
    // Predicated region
    $region53: #{rgcn_forward.2} parent=5 // pred_check
      %p753 = pneg %p752
    $region54: #{rgcn_forward.2} parent=5 // pred_check_branch
      %755 = sbr.rel (%p753) target = $region56
    $region55: #{rgcn_forward.2} parent=5 // pred_region
      %s756 = ssub.s32 %s10, 2
    $region56: #{rgcn_forward.2} parent=5 // pred_fallthru
      _
  $region6: #{rgcn_forward.2} parent=0 // loop_footer
    %s14 = sadd.s32 1, %s10
  $region7: #{rgcn_forward.2} parent=0 // loop_footer_branch
    %9 = sbr.rel target = $region3
  $region8: #{rgcn_forward.2} parent=0 // loop_exit
    _

</llo_original>
